<compile_context>
chip_gen: v6e
topology: v6e:2x2x1
jax: 0.10.0
libtpu: 0.0.40
codegen_flags: <defaults>
</compile_context>

<pallas_src>
import functools
import math

import jax
import jax.numpy as jnp
from jax import lax
from jax.experimental import pallas as pl
from jax.experimental.pallas import tpu as pltpu


# ---------------------------------------------------------------------------
# Pallas kernels
# ---------------------------------------------------------------------------

def _gemm_bias_kernel(x_ref, w_ref, b_ref, o_ref):
    # x: (tp, K)   w: (K, Np) resident   b: (1, Np) resident   o: (tp, Np)
    y = jnp.dot(x_ref[...], w_ref[...], preferred_element_type=jnp.float32)
    o_ref[...] = (y + b_ref[...].astype(jnp.float32)).astype(o_ref.dtype)


def _gemm_pos_kernel(x_ref, w_ref, pb_ref, o_ref):
    # x: (1, tp, K)   w: (K, Np) resident   pb: (tp, Np) = pos + bias   o: (1, tp, Np)
    y = jnp.dot(x_ref[0], w_ref[...], preferred_element_type=jnp.float32)
    o_ref[0] = (y + pb_ref[...].astype(jnp.float32)).astype(o_ref.dtype)


# ---------------------------------------------------------------------------
# Tiling helpers
# ---------------------------------------------------------------------------

def _round_up(x, m):
    return (x + m - 1) // m * m


def _round_down(x, m):
    return x // m * m


def _pick_row_tile(dim, target, align):
    """Return (tile, padded_dim): tile % align == 0, tile | padded_dim, and
    padding bounded (never round_up(dim, target))."""
    padded = _round_up(dim, align)
    if padded <= target:
        return padded, padded
    # Prefer an aligned divisor of `padded` close to target (no extra padding).
    best = None
    for cand in range(_round_down(target, align), align - 1, -align):
        if padded % cand == 0:
            best = cand
            break
    if best is not None and best >= max(align, target // 4):
        return best, padded
    # Fall back: at most (tile - 1) rows of padding.
    tile = _round_down(target, align)
    return tile, _round_up(dim, tile)


# ---------------------------------------------------------------------------
# Position-embedding interpolation (torch F.interpolate bicubic, a=-0.75,
# align_corners=False, border replication).  Tiny op -> plain jnp in wrapper.
# ---------------------------------------------------------------------------

def _cubic_weights(t, a=-0.75):
    t = jnp.abs(t)
    w1 = ((a + 2.0) * t - (a + 3.0)) * t * t + 1.0
    w2 = (((t - 5.0) * t + 8.0) * t - 4.0) * a
    return jnp.where(t <= 1.0, w1, jnp.where(t < 2.0, w2, 0.0))


def _bicubic_resize_matrix(out_size, in_size):
    if out_size == in_size:
        return jnp.eye(out_size, dtype=jnp.float32)
    i = jnp.arange(out_size, dtype=jnp.float32)
    src = (i + 0.5) * (in_size / out_size) - 0.5
    src0 = jnp.floor(src)
    t = src - src0
    offs = jnp.arange(-1, 3, dtype=jnp.float32)
    wts = _cubic_weights(t[:, None] - offs[None, :])                      # [out, 4]
    idx = jnp.clip(src0[:, None].astype(jnp.int32) + offs.astype(jnp.int32)[None, :],
                   0, in_size - 1)                                        # [out, 4]
    mat = jnp.zeros((out_size, in_size), jnp.float32)
    return mat.at[jnp.arange(out_size)[:, None], idx].add(wts)


def _prepare_position_embedding(position_embedding, pos_patch_shape, target_shape, hidden):
    Hp, Wp = target_shape
    pe = position_embedding.reshape(-1, hidden)          # [P0, hidden]
    p0 = pe.shape[0]
    if pos_patch_shape is None:
        side = int(round(math.sqrt(p0)))
        pos_patch_shape = (side, p0 // side)
    h0, w0 = pos_patch_shape
    pe = pe.reshape(h0, w0, hidden).astype(jnp.float32)
    if (h0, w0) != (Hp, Wp):
        # TODO(synk): non-identity bicubic resize only cross-checked against the
        # formula, not torch.nn.functional.interpolate numerics; done with tiny
        # jnp matmuls in the wrapper, not inside the Pallas kernel.
        ah = _bicubic_resize_matrix(Hp, h0)
        aw = _bicubic_resize_matrix(Wp, w0)
        pe = jnp.einsum("Hh,hwc,Ww->HWc", ah, pe, aw)
    return pe.reshape(Hp * Wp, hidden)


# ---------------------------------------------------------------------------
# Wrapper
# ---------------------------------------------------------------------------

@functools.partial(
    jax.jit,
    static_argnames=("pos_patch_shape", "tp_target", "use_bf16", "out_dtype"),
)
def layoutlmv3_patch_embeddings(pixel_values, proj_weight, proj_bias,
                                position_embedding=None, pos_patch_shape=None,
                                *, tp_target=256, use_bf16=False, out_dtype=None):
    """pixel_values: [B, C, H, W]; proj_weight: [hidden, C, ph, pw] (PyTorch
    Conv2d layout); proj_bias: [hidden]; optional position_embedding
    [1, ps0*ps1, hidden].  Returns [B, num_patches, hidden]."""
    B, C, img_h, img_w = pixel_values.shape
    N, c_w, ph, pw = proj_weight.shape
    assert C == c_w, "channel mismatch between pixel_values and proj weight"
    Hp, Wp = img_h // ph, img_w // pw
    P = Hp * Wp
    K = C * ph * pw
    out_dtype = pixel_values.dtype if out_dtype is None else out_dtype

    row_align = 16 if use_bf16 else 8
    op_dtype = jnp.bfloat16 if use_bf16 else pixel_values.dtype

    # im2col (pure layout, one XLA copy fusion): [B,C,Hp,ph,Wp,pw] -> [B,P,K].
    # TODO(synk): patchify inside the kernel (NCHW BlockSpec / manual DMA) to
    # avoid this extra HBM round trip over the activations.
    x = pixel_values.reshape(B, C, Hp, ph, Wp, pw)
    x = x.transpose(0, 2, 4, 1, 3, 5).reshape(B, P, K).astype(op_dtype)

    # Conv weight [N, C, ph, pw] -> [K, N]; bias -> [1, N] fp32.
    w = proj_weight.reshape(N, K).T.astype(op_dtype)
    b = proj_bias.reshape(1, N).astype(jnp.float32)

    N_pad = _round_up(N, 128)            # lane-dense output stores
    if N_pad != N:
        w = jnp.pad(w, ((0, 0), (0, N_pad - N)))
        b = jnp.pad(b, ((0, 0), (0, N_pad - N)))

    compiler_params_1d = pltpu.CompilerParams(
        dimension_semantics=("parallel",),
        vmem_limit_bytes=32 * 1024 * 1024,
    )
    compiler_params_2d = pltpu.CompilerParams(
        dimension_semantics=("parallel", "parallel"),
        vmem_limit_bytes=32 * 1024 * 1024,
    )

    if position_embedding is None:
        # Collapse B and P into one row axis -> full row tiles, fewer steps.
        M = B * P
        tp, M_pad = _pick_row_tile(M, tp_target, row_align)
        xm = x.reshape(M, K)
        if M_pad != M:
            xm = jnp.pad(xm, ((0, M_pad - M), (0, 0)))

        out = pl.pallas_call(
            _gemm_bias_kernel,
            out_shape=jax.ShapeDtypeStruct((M_pad, N_pad), out_dtype),
            grid_spec=pltpu.PrefetchScalarGridSpec(
                num_scalar_prefetch=0,
                grid=(M_pad // tp,),
                in_specs=[
                    pl.BlockSpec((tp, K), lambda i: (i, 0)),         # patches
                    pl.BlockSpec((K, N_pad), lambda i: (0, 0)),      # weight, resident
                    pl.BlockSpec((1, N_pad), lambda i: (0, 0)),      # bias, resident
                ],
                out_specs=pl.BlockSpec((tp, N_pad), lambda i: (i, 0)),
            ),
            compiler_params=compiler_params_1d,
        )(xm, w, b)
        return out[:M, :N].reshape(B, P, N)

    # --------------------------- pos-embedding path ---------------------------
    pos = _prepare_position_embedding(position_embedding, pos_patch_shape,
                                      (Hp, Wp), N)                   # [P, N] fp32
    pos_b = pos + b[:, :N]            # fold the conv bias in (one resident add)

    tp, P_pad = _pick_row_tile(P, tp_target, row_align)   # tiles never cross batches
    if P_pad != P:
        x = jnp.pad(x, ((0, 0), (0, P_pad - P), (0, 0)))
        pos_b = jnp.pad(pos_b, ((0, P_pad - P), (0, 0)))
    if N_pad != N:
        pos_b = jnp.pad(pos_b, ((0, 0), (0, N_pad - N)))

    out = pl.pallas_call(
        _gemm_pos_kernel,
        out_shape=jax.ShapeDtypeStruct((B, P_pad, N_pad), out_dtype),
        grid_spec=pltpu.PrefetchScalarGridSpec(
            num_scalar_prefetch=0,
            # Batch innermost: W and pos+bias block indices are constant across
            # the inner loop, so their DMAs are elided (fetched once / per row-block).
            grid=(P_pad // tp, B),
            in_specs=[
                pl.BlockSpec((1, tp, K), lambda pi, bi: (bi, pi, 0)),   # patches
                pl.BlockSpec((K, N_pad), lambda pi, bi: (0, 0)),        # weight, resident
                pl.BlockSpec((tp, N_pad), lambda pi, bi: (pi, 0)),      # pos+bias
            ],
            out_specs=pl.BlockSpec((1, tp, N_pad), lambda pi, bi: (bi, pi, 0)),
        ),
        compiler_params=compiler_params_2d,
    )(x, w, pos_b)
    return out[:, :P, :N]


# ---------------------------------------------------------------------------
# Independent reference (Conv2d + flatten/transpose), matching the PyTorch op.
# ---------------------------------------------------------------------------

def _reference(pixel_values, proj_weight, proj_bias):
    _, _, ph, pw = proj_weight.shape
    y = lax.conv_general_dilated(
        pixel_values.astype(jnp.float32), proj_weight.astype(jnp.float32),
        window_strides=(ph, pw), padding="VALID",
        dimension_numbers=("NCHW", "OIHW", "NCHW"),
        precision=lax.Precision.HIGHEST)
    y = y + proj_bias.astype(jnp.float32)[None, :, None, None]
    b, n, hp, wp = y.shape
    return y.reshape(b, n, hp * wp).transpose(0, 2, 1).astype(pixel_values.dtype)


if __name__ == "__main__":
    # Small LayoutLMv3-like config: num_channels=4, input_size=32,
    # patch_size=16, hidden_size=192 -> 2x2 patch grid, K = 4*16*16 = 1024.
    B, C, IMG, PATCH, HIDDEN = 2, 4, 32, 16, 192

    key = jax.random.PRNGKey(0)
    kx, kw, kb, kp = jax.random.split(key, 4)

    pixel_values = jax.random.normal(kx, (B, C, IMG, IMG), dtype=jnp.float32)
    proj_weight = jax.random.normal(kw, (HIDDEN, C, PATCH, PATCH), dtype=jnp.float32) * 0.02
    proj_bias = jax.random.normal(kb, (HIDDEN,), dtype=jnp.float32) * 0.02

    Hp = Wp = IMG // PATCH
    num_patches = Hp * Wp
    position_embedding = jax.random.normal(
        kp, (1, num_patches, HIDDEN), dtype=jnp.float32) * 0.02

    ref = _reference(pixel_values, proj_weight, proj_bias)

    # --- no position embedding (fp32 operands) ---
    out = layoutlmv3_patch_embeddings(pixel_values, proj_weight, proj_bias)
    out = jax.block_until_ready(out)
    assert out.shape == (B, num_patches, HIDDEN)
    assert jnp.allclose(out, ref, atol=2e-3, rtol=2e-3), "mismatch vs conv reference"

    # --- with position embedding; grid matches patch_shape -> identity interp ---
    out_pos = layoutlmv3_patch_embeddings(
        pixel_values, proj_weight, proj_bias,
        position_embedding=position_embedding, pos_patch_shape=(Hp, Wp))
    out_pos = jax.block_until_ready(out_pos)
    ref_pos = ref + position_embedding.reshape(1, num_patches, HIDDEN)
    assert jnp.allclose(out_pos, ref_pos, atol=2e-3, rtol=2e-3), "mismatch with pos emb"

    # --- bf16 operand path (fp32 accumulation), looser tolerance ---
    out_bf16 = layoutlmv3_patch_embeddings(
        pixel_values, proj_weight, proj_bias, use_bf16=True)
    out_bf16 = jax.block_until_ready(out_bf16)
    assert jnp.allclose(out_bf16.astype(jnp.float32), ref.astype(jnp.float32),
                        atol=5e-2, rtol=5e-2), "mismatch in bf16 operand path"

    print("KERNEL_OK")
</pallas_src>

<mosaic_0001>
module attributes {stable_mosaic.version = 11 : i64} {
  func.func @_gemm_bias_kernel(%arg0: i32, %arg1: memref<8x1024xf32, #tpu.memory_space<vmem>>, %arg2: memref<1024x256xf32, #tpu.memory_space<vmem>>, %arg3: memref<1x256xf32, #tpu.memory_space<vmem>>, %arg4: memref<8x256xf32, #tpu.memory_space<vmem>>) attributes {dimension_semantics = [#tpu.dimension_semantics<parallel>], iteration_bounds = array<i64: 1>, scalar_prefetch = 0 : i64, scratch_operands = 0 : i64, tpu.core_type = #tpu.core_type<tc>, window_params = [{transform_indices = @transform_0, window_bounds = array<i64: 8, 1024>}, {pipeline_mode = #tpu.pipeline_mode<synchronous>, transform_indices = @transform_1, window_bounds = array<i64: 1024, 256>}, {pipeline_mode = #tpu.pipeline_mode<synchronous>, transform_indices = @transform_2, window_bounds = array<i64: 1, 256>}, {transform_indices = @transform_3, window_bounds = array<i64: 8, 256>}]} {
    %c0 = arith.constant 0 : index
    %c0_0 = arith.constant 0 : index
    %0 = vector.load %arg1[%c0, %c0_0] : memref<8x1024xf32, #tpu.memory_space<vmem>>, vector<8x1024xf32>
    %c0_1 = arith.constant 0 : index
    %c0_2 = arith.constant 0 : index
    %1 = vector.load %arg2[%c0_1, %c0_2] : memref<1024x256xf32, #tpu.memory_space<vmem>>, vector<1024x256xf32>
    %cst = arith.constant dense<0.000000e+00> : vector<8x256xf32>
    %2 = tpu.matmul %0, %1, %cst {dimension_numbers = #tpu.dot_dimension_numbers<[1], [0], [0], [1], [0, 0, 1, 1], [], []>} : vector<8x1024xf32>, vector<1024x256xf32>, vector<8x256xf32> -> vector<8x256xf32>
    %c0_3 = arith.constant 0 : index
    %c0_4 = arith.constant 0 : index
    %3 = vector.load %arg3[%c0_3, %c0_4] : memref<1x256xf32, #tpu.memory_space<vmem>>, vector<1x256xf32>
    %4 = vector.broadcast %3 : vector<1x256xf32> to vector<8x256xf32>
    %5 = arith.addf %2, %4 : vector<8x256xf32>
    %c0_5 = arith.constant 0 : index
    %c0_6 = arith.constant 0 : index
    %6 = vector.load %arg4[%c0_5, %c0_6] : memref<8x256xf32, #tpu.memory_space<vmem>>, vector<8x256xf32>
    tpu.vector_store %arg4[%c0_5, %c0_6], %5 {strides = array<i32>} : memref<8x256xf32, #tpu.memory_space<vmem>>, vector<8x256xf32>,
    return
  }
  func.func @transform_0(%arg0: i32) -> (i32, i32) {
    %c0_i32 = arith.constant 0 : i32
    %c0_i32_0 = arith.constant 0 : i32
    return %arg0, %c0_i32 : i32, i32
  }
  func.func @transform_1(%arg0: i32) -> (i32, i32) {
    %c0_i32 = arith.constant 0 : i32
    %c0_i32_0 = arith.constant 0 : i32
    %c0_i32_1 = arith.constant 0 : i32
    return %c0_i32, %c0_i32_0 : i32, i32
  }
  func.func @transform_2(%arg0: i32) -> (i32, i32) {
    %c0_i32 = arith.constant 0 : i32
    %c0_i32_0 = arith.constant 0 : i32
    %c0_i32_1 = arith.constant 0 : i32
    return %c0_i32, %c0_i32_0 : i32, i32
  }
  func.func @transform_3(%arg0: i32) -> (i32, i32) {
    %c0_i32 = arith.constant 0 : i32
    %c0_i32_0 = arith.constant 0 : i32
    return %arg0, %c0_i32 : i32, i32
  }
}

</mosaic_0001>

<llo_original>
// kernel: layoutlmv3_patch_embeddings.1
$region0: #{layoutlmv3_patch_embeddings.1}
  #allocation0 [shape = 'u32[]', space=smem, size = 0x4, offset = 0x4, fixed_abs, tag = 'smem constant byte address 0x4 - core index']
  #allocation1 [shape = 'u32[144,128]{1,0:T(1,128)}', space=vmem, size = 0x12000, scoped, tag = 'internal scratch']
  %s0 = inlined_call_operand.vmem [shape: f32[8,1024], index: 0, kind: input, shape index: {}]
  %s1 = inlined_call_operand.vmem [shape: f32[1024,256], index: 1, kind: input, shape index: {}]
  %s2 = inlined_call_operand.vmem [shape: f32[1,256], index: 2, kind: input, shape index: {}]
  %s3 = inlined_call_operand.vmem [shape: f32[8,256], index: 3, kind: output, shape index: {}]
  %s4 = sld [smem:[#allocation0]]
  $region22: #{layoutlmv3_patch_embeddings.1} parent=0
    _
  %s6 = ssub.s32 1, %s4
  %s7 = scalar_select 0, %s6, %s4
  // Predicated region
  $region2: #{layoutlmv3_patch_embeddings.1} parent=0 // pred_check
    _
  $region3: #{layoutlmv3_patch_embeddings.1} parent=0 // pred_check_branch
    %9 = sbr.rel (0) target = $region5
  $region4: #{layoutlmv3_patch_embeddings.1} parent=0 // pred_region
    _
  $region5: #{layoutlmv3_patch_embeddings.1} parent=0 // pred_fallthru
    _
  // Predicated region
  $region6: #{layoutlmv3_patch_embeddings.1} parent=0 // pred_check
    _
  $region7: #{layoutlmv3_patch_embeddings.1} parent=0 // pred_check_branch
    %11 = sbr.rel (0) target = $region9
  $region8: #{layoutlmv3_patch_embeddings.1} parent=0 // pred_region
    _
  $region9: #{layoutlmv3_patch_embeddings.1} parent=0 // pred_fallthru
    _
  // Predicated region
  $region10: #{layoutlmv3_patch_embeddings.1} parent=0 // pred_check
    _
  $region11: #{layoutlmv3_patch_embeddings.1} parent=0 // pred_check_branch
    %13 = sbr.rel (0) target = $region13
  $region12: #{layoutlmv3_patch_embeddings.1} parent=0 // pred_region
    _
  $region13: #{layoutlmv3_patch_embeddings.1} parent=0 // pred_fallthru
    _
  %v14 = vld [vmem:[%s0] sm:$0xff]
  %v15 = vld [vmem:[%s0 + $0x8] sm:$0xff]
  %v16 = vld [vmem:[%s0 + $0x10] sm:$0xff]
  %v17 = vld [vmem:[%s0 + $0x18] sm:$0xff]
  %v18 = vld [vmem:[%s0 + $0x20] sm:$0xff]
  %v19 = vld [vmem:[%s0 + $0x28] sm:$0xff]
  %v20 = vld [vmem:[%s0 + $0x30] sm:$0xff]
  %v21 = vld [vmem:[%s0 + $0x38] sm:$0xff]
  %v22 = vld [vmem:[%s1] sm:$0xff]
  %v23 = vld [vmem:[%s1 + $0x8] sm:$0xff]
  %v24 = vld [vmem:[%s1 + $0x10] sm:$0xff]
  %v25 = vld [vmem:[%s1 + $0x18] sm:$0xff]
  %v26 = vld [vmem:[%s1 + $0x20] sm:$0xff]
  %v27 = vld [vmem:[%s1 + $0x28] sm:$0xff]
  %v28 = vld [vmem:[%s1 + $0x30] sm:$0xff]
  %v29 = vld [vmem:[%s1 + $0x38] sm:$0xff]
  %v30 = vld [vmem:[%s1 + $0x40] sm:$0xff]
  %v31 = vld [vmem:[%s1 + $0x48] sm:$0xff]
  %v32 = vld [vmem:[%s1 + $0x50] sm:$0xff]
  %v33 = vld [vmem:[%s1 + $0x58] sm:$0xff]
  %v34 = vld [vmem:[%s1 + $0x60] sm:$0xff]
  %v35 = vld [vmem:[%s1 + $0x68] sm:$0xff]
  %v36 = vld [vmem:[%s1 + $0x70] sm:$0xff]
  %v37 = vld [vmem:[%s1 + $0x78] sm:$0xff]
  %v38 = vld [vmem:[%s1 + $0x80] sm:$0xff]
  %v39 = vld [vmem:[%s1 + $0x88] sm:$0xff]
  %v40 = vld [vmem:[%s1 + $0x90] sm:$0xff]
  %v41 = vld [vmem:[%s1 + $0x98] sm:$0xff]
  %v42 = vld [vmem:[%s1 + $0xa0] sm:$0xff]
  %v43 = vld [vmem:[%s1 + $0xa8] sm:$0xff]
  %v44 = vld [vmem:[%s1 + $0xb0] sm:$0xff]
  %v45 = vld [vmem:[%s1 + $0xb8] sm:$0xff]
  %v46 = vld [vmem:[%s1 + $0xc0] sm:$0xff]
  %v47 = vld [vmem:[%s1 + $0xc8] sm:$0xff]
  %v48 = vld [vmem:[%s1 + $0xd0] sm:$0xff]
  %v49 = vld [vmem:[%s1 + $0xd8] sm:$0xff]
  %v50 = vld [vmem:[%s1 + $0xe0] sm:$0xff]
  %v51 = vld [vmem:[%s1 + $0xe8] sm:$0xff]
  %v52 = vld [vmem:[%s1 + $0xf0] sm:$0xff]
  %v53 = vld [vmem:[%s1 + $0xf8] sm:$0xff]
  %v54 = vld [vmem:[%s1 + $0x100] sm:$0xff]
  %v55 = vld [vmem:[%s1 + $0x108] sm:$0xff]
  %v56 = vld [vmem:[%s1 + $0x110] sm:$0xff]
  %v57 = vld [vmem:[%s1 + $0x118] sm:$0xff]
  %v58 = vld [vmem:[%s1 + $0x120] sm:$0xff]
  %v59 = vld [vmem:[%s1 + $0x128] sm:$0xff]
  %v60 = vld [vmem:[%s1 + $0x130] sm:$0xff]
  %v61 = vld [vmem:[%s1 + $0x138] sm:$0xff]
  %v62 = vld [vmem:[%s1 + $0x140] sm:$0xff]
  %v63 = vld [vmem:[%s1 + $0x148] sm:$0xff]
  %v64 = vld [vmem:[%s1 + $0x150] sm:$0xff]
  %v65 = vld [vmem:[%s1 + $0x158] sm:$0xff]
  %v66 = vld [vmem:[%s1 + $0x160] sm:$0xff]
  %v67 = vld [vmem:[%s1 + $0x168] sm:$0xff]
  %v68 = vld [vmem:[%s1 + $0x170] sm:$0xff]
  %v69 = vld [vmem:[%s1 + $0x178] sm:$0xff]
  %v70 = vld [vmem:[%s1 + $0x180] sm:$0xff]
  %v71 = vld [vmem:[%s1 + $0x188] sm:$0xff]
  %v72 = vld [vmem:[%s1 + $0x190] sm:$0xff]
  %v73 = vld [vmem:[%s1 + $0x198] sm:$0xff]
  %v74 = vld [vmem:[%s1 + $0x1a0] sm:$0xff]
  %v75 = vld [vmem:[%s1 + $0x1a8] sm:$0xff]
  %v76 = vld [vmem:[%s1 + $0x1b0] sm:$0xff]
  %v77 = vld [vmem:[%s1 + $0x1b8] sm:$0xff]
  %v78 = vld [vmem:[%s1 + $0x1c0] sm:$0xff]
  %v79 = vld [vmem:[%s1 + $0x1c8] sm:$0xff]
  %v80 = vld [vmem:[%s1 + $0x1d0] sm:$0xff]
  %v81 = vld [vmem:[%s1 + $0x1d8] sm:$0xff]
  %v82 = vld [vmem:[%s1 + $0x1e0] sm:$0xff]
  %v83 = vld [vmem:[%s1 + $0x1e8] sm:$0xff]
  %v84 = vld [vmem:[%s1 + $0x1f0] sm:$0xff]
  %v85 = vld [vmem:[%s1 + $0x1f8] sm:$0xff]
  %v86 = vld [vmem:[%s1 + $0x200] sm:$0xff]
  %v87 = vld [vmem:[%s1 + $0x208] sm:$0xff]
  %v88 = vld [vmem:[%s1 + $0x210] sm:$0xff]
  %v89 = vld [vmem:[%s1 + $0x218] sm:$0xff]
  %v90 = vld [vmem:[%s1 + $0x220] sm:$0xff]
  %v91 = vld [vmem:[%s1 + $0x228] sm:$0xff]
  %v92 = vld [vmem:[%s1 + $0x230] sm:$0xff]
  %v93 = vld [vmem:[%s1 + $0x238] sm:$0xff]
  %v94 = vld [vmem:[%s1 + $0x240] sm:$0xff]
  %v95 = vld [vmem:[%s1 + $0x248] sm:$0xff]
  %v96 = vld [vmem:[%s1 + $0x250] sm:$0xff]
  %v97 = vld [vmem:[%s1 + $0x258] sm:$0xff]
  %v98 = vld [vmem:[%s1 + $0x260] sm:$0xff]
  %v99 = vld [vmem:[%s1 + $0x268] sm:$0xff]
  %v100 = vld [vmem:[%s1 + $0x270] sm:$0xff]
  %v101 = vld [vmem:[%s1 + $0x278] sm:$0xff]
  %v102 = vld [vmem:[%s1 + $0x280] sm:$0xff]
  %v103 = vld [vmem:[%s1 + $0x288] sm:$0xff]
  %v104 = vld [vmem:[%s1 + $0x290] sm:$0xff]
  %v105 = vld [vmem:[%s1 + $0x298] sm:$0xff]
  %v106 = vld [vmem:[%s1 + $0x2a0] sm:$0xff]
  %v107 = vld [vmem:[%s1 + $0x2a8] sm:$0xff]
  %v108 = vld [vmem:[%s1 + $0x2b0] sm:$0xff]
  %v109 = vld [vmem:[%s1 + $0x2b8] sm:$0xff]
  %v110 = vld [vmem:[%s1 + $0x2c0] sm:$0xff]
  %v111 = vld [vmem:[%s1 + $0x2c8] sm:$0xff]
  %v112 = vld [vmem:[%s1 + $0x2d0] sm:$0xff]
  %v113 = vld [vmem:[%s1 + $0x2d8] sm:$0xff]
  %v114 = vld [vmem:[%s1 + $0x2e0] sm:$0xff]
  %v115 = vld [vmem:[%s1 + $0x2e8] sm:$0xff]
  %v116 = vld [vmem:[%s1 + $0x2f0] sm:$0xff]
  %v117 = vld [vmem:[%s1 + $0x2f8] sm:$0xff]
  %v118 = vld [vmem:[%s1 + $0x300] sm:$0xff]
  %v119 = vld [vmem:[%s1 + $0x308] sm:$0xff]
  %v120 = vld [vmem:[%s1 + $0x310] sm:$0xff]
  %v121 = vld [vmem:[%s1 + $0x318] sm:$0xff]
  %v122 = vld [vmem:[%s1 + $0x320] sm:$0xff]
  %v123 = vld [vmem:[%s1 + $0x328] sm:$0xff]
  %v124 = vld [vmem:[%s1 + $0x330] sm:$0xff]
  %v125 = vld [vmem:[%s1 + $0x338] sm:$0xff]
  %v126 = vld [vmem:[%s1 + $0x340] sm:$0xff]
  %v127 = vld [vmem:[%s1 + $0x348] sm:$0xff]
  %v128 = vld [vmem:[%s1 + $0x350] sm:$0xff]
  %v129 = vld [vmem:[%s1 + $0x358] sm:$0xff]
  %v130 = vld [vmem:[%s1 + $0x360] sm:$0xff]
  %v131 = vld [vmem:[%s1 + $0x368] sm:$0xff]
  %v132 = vld [vmem:[%s1 + $0x370] sm:$0xff]
  %v133 = vld [vmem:[%s1 + $0x378] sm:$0xff]
  %v134 = vld [vmem:[%s1 + $0x380] sm:$0xff]
  %v135 = vld [vmem:[%s1 + $0x388] sm:$0xff]
  %v136 = vld [vmem:[%s1 + $0x390] sm:$0xff]
  %v137 = vld [vmem:[%s1 + $0x398] sm:$0xff]
  %v138 = vld [vmem:[%s1 + $0x3a0] sm:$0xff]
  %v139 = vld [vmem:[%s1 + $0x3a8] sm:$0xff]
  %v140 = vld [vmem:[%s1 + $0x3b0] sm:$0xff]
  %v141 = vld [vmem:[%s1 + $0x3b8] sm:$0xff]
  %v142 = vld [vmem:[%s1 + $0x3c0] sm:$0xff]
  %v143 = vld [vmem:[%s1 + $0x3c8] sm:$0xff]
  %v144 = vld [vmem:[%s1 + $0x3d0] sm:$0xff]
  %v145 = vld [vmem:[%s1 + $0x3d8] sm:$0xff]
  %v146 = vld [vmem:[%s1 + $0x3e0] sm:$0xff]
  %v147 = vld [vmem:[%s1 + $0x3e8] sm:$0xff]
  %v148 = vld [vmem:[%s1 + $0x3f0] sm:$0xff]
  %v149 = vld [vmem:[%s1 + $0x3f8] sm:$0xff]
  %v150 = vld [vmem:[%s1 + $0x400] sm:$0xff]
  %v151 = vld [vmem:[%s1 + $0x408] sm:$0xff]
  %v152 = vld [vmem:[%s1 + $0x410] sm:$0xff]
  %v153 = vld [vmem:[%s1 + $0x418] sm:$0xff]
  %v154 = vld [vmem:[%s1 + $0x420] sm:$0xff]
  %v155 = vld [vmem:[%s1 + $0x428] sm:$0xff]
  %v156 = vld [vmem:[%s1 + $0x430] sm:$0xff]
  %v157 = vld [vmem:[%s1 + $0x438] sm:$0xff]
  %v158 = vld [vmem:[%s1 + $0x440] sm:$0xff]
  %v159 = vld [vmem:[%s1 + $0x448] sm:$0xff]
  %v160 = vld [vmem:[%s1 + $0x450] sm:$0xff]
  %v161 = vld [vmem:[%s1 + $0x458] sm:$0xff]
  %v162 = vld [vmem:[%s1 + $0x460] sm:$0xff]
  %v163 = vld [vmem:[%s1 + $0x468] sm:$0xff]
  %v164 = vld [vmem:[%s1 + $0x470] sm:$0xff]
  %v165 = vld [vmem:[%s1 + $0x478] sm:$0xff]
  %v166 = vld [vmem:[%s1 + $0x480] sm:$0xff]
  %v167 = vld [vmem:[%s1 + $0x488] sm:$0xff]
  %v168 = vld [vmem:[%s1 + $0x490] sm:$0xff]
  %v169 = vld [vmem:[%s1 + $0x498] sm:$0xff]
  %v170 = vld [vmem:[%s1 + $0x4a0] sm:$0xff]
  %v171 = vld [vmem:[%s1 + $0x4a8] sm:$0xff]
  %v172 = vld [vmem:[%s1 + $0x4b0] sm:$0xff]
  %v173 = vld [vmem:[%s1 + $0x4b8] sm:$0xff]
  %v174 = vld [vmem:[%s1 + $0x4c0] sm:$0xff]
  %v175 = vld [vmem:[%s1 + $0x4c8] sm:$0xff]
  %v176 = vld [vmem:[%s1 + $0x4d0] sm:$0xff]
  %v177 = vld [vmem:[%s1 + $0x4d8] sm:$0xff]
  %v178 = vld [vmem:[%s1 + $0x4e0] sm:$0xff]
  %v179 = vld [vmem:[%s1 + $0x4e8] sm:$0xff]
  %v180 = vld [vmem:[%s1 + $0x4f0] sm:$0xff]
  %v181 = vld [vmem:[%s1 + $0x4f8] sm:$0xff]
  %v182 = vld [vmem:[%s1 + $0x500] sm:$0xff]
  %v183 = vld [vmem:[%s1 + $0x508] sm:$0xff]
  %v184 = vld [vmem:[%s1 + $0x510] sm:$0xff]
  %v185 = vld [vmem:[%s1 + $0x518] sm:$0xff]
  %v186 = vld [vmem:[%s1 + $0x520] sm:$0xff]
  %v187 = vld [vmem:[%s1 + $0x528] sm:$0xff]
  %v188 = vld [vmem:[%s1 + $0x530] sm:$0xff]
  %v189 = vld [vmem:[%s1 + $0x538] sm:$0xff]
  %v190 = vld [vmem:[%s1 + $0x540] sm:$0xff]
  %v191 = vld [vmem:[%s1 + $0x548] sm:$0xff]
  %v192 = vld [vmem:[%s1 + $0x550] sm:$0xff]
  %v193 = vld [vmem:[%s1 + $0x558] sm:$0xff]
  %v194 = vld [vmem:[%s1 + $0x560] sm:$0xff]
  %v195 = vld [vmem:[%s1 + $0x568] sm:$0xff]
  %v196 = vld [vmem:[%s1 + $0x570] sm:$0xff]
  %v197 = vld [vmem:[%s1 + $0x578] sm:$0xff]
  %v198 = vld [vmem:[%s1 + $0x580] sm:$0xff]
  %v199 = vld [vmem:[%s1 + $0x588] sm:$0xff]
  %v200 = vld [vmem:[%s1 + $0x590] sm:$0xff]
  %v201 = vld [vmem:[%s1 + $0x598] sm:$0xff]
  %v202 = vld [vmem:[%s1 + $0x5a0] sm:$0xff]
  %v203 = vld [vmem:[%s1 + $0x5a8] sm:$0xff]
  %v204 = vld [vmem:[%s1 + $0x5b0] sm:$0xff]
  %v205 = vld [vmem:[%s1 + $0x5b8] sm:$0xff]
  %v206 = vld [vmem:[%s1 + $0x5c0] sm:$0xff]
  %v207 = vld [vmem:[%s1 + $0x5c8] sm:$0xff]
  %v208 = vld [vmem:[%s1 + $0x5d0] sm:$0xff]
  %v209 = vld [vmem:[%s1 + $0x5d8] sm:$0xff]
  %v210 = vld [vmem:[%s1 + $0x5e0] sm:$0xff]
  %v211 = vld [vmem:[%s1 + $0x5e8] sm:$0xff]
  %v212 = vld [vmem:[%s1 + $0x5f0] sm:$0xff]
  %v213 = vld [vmem:[%s1 + $0x5f8] sm:$0xff]
  %v214 = vld [vmem:[%s1 + $0x600] sm:$0xff]
  %v215 = vld [vmem:[%s1 + $0x608] sm:$0xff]
  %v216 = vld [vmem:[%s1 + $0x610] sm:$0xff]
  %v217 = vld [vmem:[%s1 + $0x618] sm:$0xff]
  %v218 = vld [vmem:[%s1 + $0x620] sm:$0xff]
  %v219 = vld [vmem:[%s1 + $0x628] sm:$0xff]
  %v220 = vld [vmem:[%s1 + $0x630] sm:$0xff]
  %v221 = vld [vmem:[%s1 + $0x638] sm:$0xff]
  %v222 = vld [vmem:[%s1 + $0x640] sm:$0xff]
  %v223 = vld [vmem:[%s1 + $0x648] sm:$0xff]
  %v224 = vld [vmem:[%s1 + $0x650] sm:$0xff]
  %v225 = vld [vmem:[%s1 + $0x658] sm:$0xff]
  %v226 = vld [vmem:[%s1 + $0x660] sm:$0xff]
  %v227 = vld [vmem:[%s1 + $0x668] sm:$0xff]
  %v228 = vld [vmem:[%s1 + $0x670] sm:$0xff]
  %v229 = vld [vmem:[%s1 + $0x678] sm:$0xff]
  %v230 = vld [vmem:[%s1 + $0x680] sm:$0xff]
  %v231 = vld [vmem:[%s1 + $0x688] sm:$0xff]
  %v232 = vld [vmem:[%s1 + $0x690] sm:$0xff]
  %v233 = vld [vmem:[%s1 + $0x698] sm:$0xff]
  %v234 = vld [vmem:[%s1 + $0x6a0] sm:$0xff]
  %v235 = vld [vmem:[%s1 + $0x6a8] sm:$0xff]
  %v236 = vld [vmem:[%s1 + $0x6b0] sm:$0xff]
  %v237 = vld [vmem:[%s1 + $0x6b8] sm:$0xff]
  %v238 = vld [vmem:[%s1 + $0x6c0] sm:$0xff]
  %v239 = vld [vmem:[%s1 + $0x6c8] sm:$0xff]
  %v240 = vld [vmem:[%s1 + $0x6d0] sm:$0xff]
  %v241 = vld [vmem:[%s1 + $0x6d8] sm:$0xff]
  %v242 = vld [vmem:[%s1 + $0x6e0] sm:$0xff]
  %v243 = vld [vmem:[%s1 + $0x6e8] sm:$0xff]
  %v244 = vld [vmem:[%s1 + $0x6f0] sm:$0xff]
  %v245 = vld [vmem:[%s1 + $0x6f8] sm:$0xff]
  %v246 = vld [vmem:[%s1 + $0x700] sm:$0xff]
  %v247 = vld [vmem:[%s1 + $0x708] sm:$0xff]
  %v248 = vld [vmem:[%s1 + $0x710] sm:$0xff]
  %v249 = vld [vmem:[%s1 + $0x718] sm:$0xff]
  %v250 = vld [vmem:[%s1 + $0x720] sm:$0xff]
  %v251 = vld [vmem:[%s1 + $0x728] sm:$0xff]
  %v252 = vld [vmem:[%s1 + $0x730] sm:$0xff]
  %v253 = vld [vmem:[%s1 + $0x738] sm:$0xff]
  %v254 = vld [vmem:[%s1 + $0x740] sm:$0xff]
  %v255 = vld [vmem:[%s1 + $0x748] sm:$0xff]
  %v256 = vld [vmem:[%s1 + $0x750] sm:$0xff]
  %v257 = vld [vmem:[%s1 + $0x758] sm:$0xff]
  %v258 = vld [vmem:[%s1 + $0x760] sm:$0xff]
  %v259 = vld [vmem:[%s1 + $0x768] sm:$0xff]
  %v260 = vld [vmem:[%s1 + $0x770] sm:$0xff]
  %v261 = vld [vmem:[%s1 + $0x778] sm:$0xff]
  %v262 = vld [vmem:[%s1 + $0x780] sm:$0xff]
  %v263 = vld [vmem:[%s1 + $0x788] sm:$0xff]
  %v264 = vld [vmem:[%s1 + $0x790] sm:$0xff]
  %v265 = vld [vmem:[%s1 + $0x798] sm:$0xff]
  %v266 = vld [vmem:[%s1 + $0x7a0] sm:$0xff]
  %v267 = vld [vmem:[%s1 + $0x7a8] sm:$0xff]
  %v268 = vld [vmem:[%s1 + $0x7b0] sm:$0xff]
  %v269 = vld [vmem:[%s1 + $0x7b8] sm:$0xff]
  %v270 = vld [vmem:[%s1 + $0x7c0] sm:$0xff]
  %v271 = vld [vmem:[%s1 + $0x7c8] sm:$0xff]
  %v272 = vld [vmem:[%s1 + $0x7d0] sm:$0xff]
  %v273 = vld [vmem:[%s1 + $0x7d8] sm:$0xff]
  %v274 = vld [vmem:[%s1 + $0x7e0] sm:$0xff]
  %v275 = vld [vmem:[%s1 + $0x7e8] sm:$0xff]
  %v276 = vld [vmem:[%s1 + $0x7f0] sm:$0xff]
  %v277 = vld [vmem:[%s1 + $0x7f8] sm:$0xff]
  %v278 = vld [vmem:[%s2] sm:$0x3]
  %v280 = vlaneseq
  %v281 = vshrl.u32 %v280, 7
  %v282 = vsub.s32 0, %v281
  %v283 = vrot.slane %v278, %v282
  %v284 = vlaneseq
  %v285 = vshrl.u32 %v284, 7
  %v286 = vsub.s32 1, %v285
  %v287 = vrot.slane %v278, %v286
  %290 = vmatprep.subr.mxu0 %v53
  %291 = vmatpush1.msra.mxu0 %v52
  %292 = vmatprep.subr.mxu0 %v51
  %293 = vmatpush1.msra.mxu0 %v50
  %294 = vmatprep.subr.mxu0 %v49
  %295 = vmatpush1.msra.mxu0 %v48
  %296 = vmatprep.subr.mxu0 %v47
  %297 = vmatpush1.msra.mxu0 %v46
  %298 = vmatprep.subr.mxu0 %v45
  %299 = vmatpush1.msra.mxu0 %v44
  %300 = vmatprep.subr.mxu0 %v43
  %301 = vmatpush1.msra.mxu0 %v42
  %302 = vmatprep.subr.mxu0 %v41
  %303 = vmatpush1.msra.mxu0 %v40
  %304 = vmatprep.subr.mxu0 %v39
  %305 = vmatpush1.msra.mxu0 %v38
  %306 = vmatprep.subr.mxu0 %v37
  %307 = vmatpush1.msra.mxu0 %v36
  %308 = vmatprep.subr.mxu0 %v35
  %309 = vmatpush1.msra.mxu0 %v34
  %310 = vmatprep.subr.mxu0 %v33
  %311 = vmatpush1.msra.mxu0 %v32
  %312 = vmatprep.subr.mxu0 %v31
  %313 = vmatpush1.msra.mxu0 %v30
  %314 = vmatprep.subr.mxu0 %v29
  %315 = vmatpush1.msra.mxu0 %v28
  %316 = vmatprep.subr.mxu0 %v27
  %317 = vmatpush1.msra.mxu0 %v26
  %318 = vmatprep.subr.mxu0 %v25
  %319 = vmatpush1.msra.mxu0 %v24
  %320 = vmatprep.subr.mxu0 %v23
  %321 = vmatpush1.msra.mxu0 %v22
  %322 = vmatprep.subr.mxu0 %v85
  %323 = vmatpush2.msra.mxu0 %v84
  %324 = vmatprep.subr.mxu0 %v83
  %325 = vmatpush2.msra.mxu0 %v82
  %326 = vmatprep.subr.mxu0 %v81
  %327 = vmatpush2.msra.mxu0 %v80
  %328 = vmatprep.subr.mxu0 %v79
  %329 = vmatpush2.msra.mxu0 %v78
  %330 = vmatprep.subr.mxu0 %v77
  %331 = vmatpush2.msra.mxu0 %v76
  %332 = vmatprep.subr.mxu0 %v75
  %333 = vmatpush2.msra.mxu0 %v74
  %334 = vmatprep.subr.mxu0 %v73
  %335 = vmatpush2.msra.mxu0 %v72
  %336 = vmatprep.subr.mxu0 %v71
  %337 = vmatpush2.msra.mxu0 %v70
  %338 = vmatprep.subr.mxu0 %v69
  %339 = vmatpush2.msra.mxu0 %v68
  %340 = vmatprep.subr.mxu0 %v67
  %341 = vmatpush2.msra.mxu0 %v66
  %342 = vmatprep.subr.mxu0 %v65
  %343 = vmatpush2.msra.mxu0 %v64
  %344 = vmatprep.subr.mxu0 %v63
  %345 = vmatpush2.msra.mxu0 %v62
  %346 = vmatprep.subr.mxu0 %v61
  %347 = vmatpush2.msra.mxu0 %v60
  %348 = vmatprep.subr.mxu0 %v59
  %349 = vmatpush2.msra.mxu0 %v58
  %350 = vmatprep.subr.mxu0 %v57
  %351 = vmatpush2.msra.mxu0 %v56
  %352 = vmatprep.subr.mxu0 %v55
  %353 = vmatpush2.msra.mxu0 %v54
  %354 = vmatprep.mubr.f32.mxu0 %v15
  %355 = vmatmul.mubr.f32.gmra.mxu0 %v14
  %v356 = vpop.f32.mrf.mxu0
  %v357 = vadd.f32 %v283, %v356
  %v358 = vpop.f32.mrf.mxu0
  %v359 = vadd.f32 %v287, %v358
  %360 = vdwg.mxu0
  %361 = vmatprep.subr.mxu0 %v117
  %362 = vmatpush1.msra.mxu0 %v116
  %363 = vmatprep.subr.mxu0 %v115
  %364 = vmatpush1.msra.mxu0 %v114
  %365 = vmatprep.subr.mxu0 %v113
  %366 = vmatpush1.msra.mxu0 %v112
  %367 = vmatprep.subr.mxu0 %v111
  %368 = vmatpush1.msra.mxu0 %v110
  %369 = vmatprep.subr.mxu0 %v109
  %370 = vmatpush1.msra.mxu0 %v108
  %371 = vmatprep.subr.mxu0 %v107
  %372 = vmatpush1.msra.mxu0 %v106
  %373 = vmatprep.subr.mxu0 %v105
  %374 = vmatpush1.msra.mxu0 %v104
  %375 = vmatprep.subr.mxu0 %v103
  %376 = vmatpush1.msra.mxu0 %v102
  %377 = vmatprep.subr.mxu0 %v101
  %378 = vmatpush1.msra.mxu0 %v100
  %379 = vmatprep.subr.mxu0 %v99
  %380 = vmatpush1.msra.mxu0 %v98
  %381 = vmatprep.subr.mxu0 %v97
  %382 = vmatpush1.msra.mxu0 %v96
  %383 = vmatprep.subr.mxu0 %v95
  %384 = vmatpush1.msra.mxu0 %v94
  %385 = vmatprep.subr.mxu0 %v93
  %386 = vmatpush1.msra.mxu0 %v92
  %387 = vmatprep.subr.mxu0 %v91
  %388 = vmatpush1.msra.mxu0 %v90
  %389 = vmatprep.subr.mxu0 %v89
  %390 = vmatpush1.msra.mxu0 %v88
  %391 = vmatprep.subr.mxu0 %v87
  %392 = vmatpush1.msra.mxu0 %v86
  %393 = vmatprep.subr.mxu0 %v149
  %394 = vmatpush2.msra.mxu0 %v148
  %395 = vmatprep.subr.mxu0 %v147
  %396 = vmatpush2.msra.mxu0 %v146
  %397 = vmatprep.subr.mxu0 %v145
  %398 = vmatpush2.msra.mxu0 %v144
  %399 = vmatprep.subr.mxu0 %v143
  %400 = vmatpush2.msra.mxu0 %v142
  %401 = vmatprep.subr.mxu0 %v141
  %402 = vmatpush2.msra.mxu0 %v140
  %403 = vmatprep.subr.mxu0 %v139
  %404 = vmatpush2.msra.mxu0 %v138
  %405 = vmatprep.subr.mxu0 %v137
  %406 = vmatpush2.msra.mxu0 %v136
  %407 = vmatprep.subr.mxu0 %v135
  %408 = vmatpush2.msra.mxu0 %v134
  %409 = vmatprep.subr.mxu0 %v133
  %410 = vmatpush2.msra.mxu0 %v132
  %411 = vmatprep.subr.mxu0 %v131
  %412 = vmatpush2.msra.mxu0 %v130
  %413 = vmatprep.subr.mxu0 %v129
  %414 = vmatpush2.msra.mxu0 %v128
  %415 = vmatprep.subr.mxu0 %v127
  %416 = vmatpush2.msra.mxu0 %v126
  %417 = vmatprep.subr.mxu0 %v125
  %418 = vmatpush2.msra.mxu0 %v124
  %419 = vmatprep.subr.mxu0 %v123
  %420 = vmatpush2.msra.mxu0 %v122
  %421 = vmatprep.subr.mxu0 %v121
  %422 = vmatpush2.msra.mxu0 %v120
  %423 = vmatprep.subr.mxu0 %v119
  %424 = vmatpush2.msra.mxu0 %v118
  %425 = vmatprep.mubr.f32.mxu0 %v17
  %426 = vmatmul.mubr.f32.gmra.mxu0 %v16
  %v427 = vpop.f32.mrf.mxu0
  %v428 = vadd.f32 %v357, %v427
  %v429 = vpop.f32.mrf.mxu0
  %v430 = vadd.f32 %v359, %v429
  %431 = vdwg.mxu0
  %432 = vmatprep.subr.mxu0 %v181
  %433 = vmatpush1.msra.mxu0 %v180
  %434 = vmatprep.subr.mxu0 %v179
  %435 = vmatpush1.msra.mxu0 %v178
  %436 = vmatprep.subr.mxu0 %v177
  %437 = vmatpush1.msra.mxu0 %v176
  %438 = vmatprep.subr.mxu0 %v175
  %439 = vmatpush1.msra.mxu0 %v174
  %440 = vmatprep.subr.mxu0 %v173
  %441 = vmatpush1.msra.mxu0 %v172
  %442 = vmatprep.subr.mxu0 %v171
  %443 = vmatpush1.msra.mxu0 %v170
  %444 = vmatprep.subr.mxu0 %v169
  %445 = vmatpush1.msra.mxu0 %v168
  %446 = vmatprep.subr.mxu0 %v167
  %447 = vmatpush1.msra.mxu0 %v166
  %448 = vmatprep.subr.mxu0 %v165
  %449 = vmatpush1.msra.mxu0 %v164
  %450 = vmatprep.subr.mxu0 %v163
  %451 = vmatpush1.msra.mxu0 %v162
  %452 = vmatprep.subr.mxu0 %v161
  %453 = vmatpush1.msra.mxu0 %v160
  %454 = vmatprep.subr.mxu0 %v159
  %455 = vmatpush1.msra.mxu0 %v158
  %456 = vmatprep.subr.mxu0 %v157
  %457 = vmatpush1.msra.mxu0 %v156
  %458 = vmatprep.subr.mxu0 %v155
  %459 = vmatpush1.msra.mxu0 %v154
  %460 = vmatprep.subr.mxu0 %v153
  %461 = vmatpush1.msra.mxu0 %v152
  %462 = vmatprep.subr.mxu0 %v151
  %463 = vmatpush1.msra.mxu0 %v150
  %464 = vmatprep.subr.mxu0 %v213
  %465 = vmatpush2.msra.mxu0 %v212
  %466 = vmatprep.subr.mxu0 %v211
  %467 = vmatpush2.msra.mxu0 %v210
  %468 = vmatprep.subr.mxu0 %v209
  %469 = vmatpush2.msra.mxu0 %v208
  %470 = vmatprep.subr.mxu0 %v207
  %471 = vmatpush2.msra.mxu0 %v206
  %472 = vmatprep.subr.mxu0 %v205
  %473 = vmatpush2.msra.mxu0 %v204
  %474 = vmatprep.subr.mxu0 %v203
  %475 = vmatpush2.msra.mxu0 %v202
  %476 = vmatprep.subr.mxu0 %v201
  %477 = vmatpush2.msra.mxu0 %v200
  %478 = vmatprep.subr.mxu0 %v199
  %479 = vmatpush2.msra.mxu0 %v198
  %480 = vmatprep.subr.mxu0 %v197
  %481 = vmatpush2.msra.mxu0 %v196
  %482 = vmatprep.subr.mxu0 %v195
  %483 = vmatpush2.msra.mxu0 %v194
  %484 = vmatprep.subr.mxu0 %v193
  %485 = vmatpush2.msra.mxu0 %v192
  %486 = vmatprep.subr.mxu0 %v191
  %487 = vmatpush2.msra.mxu0 %v190
  %488 = vmatprep.subr.mxu0 %v189
  %489 = vmatpush2.msra.mxu0 %v188
  %490 = vmatprep.subr.mxu0 %v187
  %491 = vmatpush2.msra.mxu0 %v186
  %492 = vmatprep.subr.mxu0 %v185
  %493 = vmatpush2.msra.mxu0 %v184
  %494 = vmatprep.subr.mxu0 %v183
  %495 = vmatpush2.msra.mxu0 %v182
  %496 = vmatprep.mubr.f32.mxu0 %v19
  %497 = vmatmul.mubr.f32.gmra.mxu0 %v18
  %v498 = vpop.f32.mrf.mxu0
  %v499 = vadd.f32 %v428, %v498
  %v500 = vpop.f32.mrf.mxu0
  %v501 = vadd.f32 %v430, %v500
  %502 = vdwg.mxu0
  %503 = vmatprep.subr.mxu0 %v245
  %504 = vmatpush1.msra.mxu0 %v244
  %505 = vmatprep.subr.mxu0 %v243
  %506 = vmatpush1.msra.mxu0 %v242
  %507 = vmatprep.subr.mxu0 %v241
  %508 = vmatpush1.msra.mxu0 %v240
  %509 = vmatprep.subr.mxu0 %v239
  %510 = vmatpush1.msra.mxu0 %v238
  %511 = vmatprep.subr.mxu0 %v237
  %512 = vmatpush1.msra.mxu0 %v236
  %513 = vmatprep.subr.mxu0 %v235
  %514 = vmatpush1.msra.mxu0 %v234
  %515 = vmatprep.subr.mxu0 %v233
  %516 = vmatpush1.msra.mxu0 %v232
  %517 = vmatprep.subr.mxu0 %v231
  %518 = vmatpush1.msra.mxu0 %v230
  %519 = vmatprep.subr.mxu0 %v229
  %520 = vmatpush1.msra.mxu0 %v228
  %521 = vmatprep.subr.mxu0 %v227
  %522 = vmatpush1.msra.mxu0 %v226
  %523 = vmatprep.subr.mxu0 %v225
  %524 = vmatpush1.msra.mxu0 %v224
  %525 = vmatprep.subr.mxu0 %v223
  %526 = vmatpush1.msra.mxu0 %v222
  %527 = vmatprep.subr.mxu0 %v221
  %528 = vmatpush1.msra.mxu0 %v220
  %529 = vmatprep.subr.mxu0 %v219
  %530 = vmatpush1.msra.mxu0 %v218
  %531 = vmatprep.subr.mxu0 %v217
  %532 = vmatpush1.msra.mxu0 %v216
  %533 = vmatprep.subr.mxu0 %v215
  %534 = vmatpush1.msra.mxu0 %v214
  %535 = vmatprep.subr.mxu0 %v277
  %536 = vmatpush2.msra.mxu0 %v276
  %537 = vmatprep.subr.mxu0 %v275
  %538 = vmatpush2.msra.mxu0 %v274
  %539 = vmatprep.subr.mxu0 %v273
  %540 = vmatpush2.msra.mxu0 %v272
  %541 = vmatprep.subr.mxu0 %v271
  %542 = vmatpush2.msra.mxu0 %v270
  %543 = vmatprep.subr.mxu0 %v269
  %544 = vmatpush2.msra.mxu0 %v268
  %545 = vmatprep.subr.mxu0 %v267
  %546 = vmatpush2.msra.mxu0 %v266
  %547 = vmatprep.subr.mxu0 %v265
  %548 = vmatpush2.msra.mxu0 %v264
  %549 = vmatprep.subr.mxu0 %v263
  %550 = vmatpush2.msra.mxu0 %v262
  %551 = vmatprep.subr.mxu0 %v261
  %552 = vmatpush2.msra.mxu0 %v260
  %553 = vmatprep.subr.mxu0 %v259
  %554 = vmatpush2.msra.mxu0 %v258
  %555 = vmatprep.subr.mxu0 %v257
  %556 = vmatpush2.msra.mxu0 %v256
  %557 = vmatprep.subr.mxu0 %v255
  %558 = vmatpush2.msra.mxu0 %v254
  %559 = vmatprep.subr.mxu0 %v253
  %560 = vmatpush2.msra.mxu0 %v252
  %561 = vmatprep.subr.mxu0 %v251
  %562 = vmatpush2.msra.mxu0 %v250
  %563 = vmatprep.subr.mxu0 %v249
  %564 = vmatpush2.msra.mxu0 %v248
  %565 = vmatprep.subr.mxu0 %v247
  %566 = vmatpush2.msra.mxu0 %v246
  %567 = vmatprep.mubr.f32.mxu0 %v21
  %568 = vmatmul.mubr.f32.gmra.mxu0 %v20
  %v569 = vpop.f32.mrf.mxu0
  %v570 = vadd.f32 %v499, %v569
  %v571 = vpop.f32.mrf.mxu0
  %v572 = vadd.f32 %v501, %v571
  %573 = vdwg.mxu0
  %574 = vst [vmem:[%s3] sm:$0xff] %v570
  %575 = vst [vmem:[%s3 + $0x8] sm:$0xff] %v572
  // Predicated region
  $region14: #{layoutlmv3_patch_embeddings.1} parent=0 // pred_check
    _
  $region15: #{layoutlmv3_patch_embeddings.1} parent=0 // pred_check_branch
    %577 = sbr.rel (0) target = $region17
  $region16: #{layoutlmv3_patch_embeddings.1} parent=0 // pred_region
    _
  $region17: #{layoutlmv3_patch_embeddings.1} parent=0 // pred_fallthru
    _
  // Predicated region
  $region18: #{layoutlmv3_patch_embeddings.1} parent=0 // pred_check
    _
  $region19: #{layoutlmv3_patch_embeddings.1} parent=0 // pred_check_branch
    %579 = sbr.rel (0) target = $region21
  $region20: #{layoutlmv3_patch_embeddings.1} parent=0 // pred_region
    _
  $region21: #{layoutlmv3_patch_embeddings.1} parent=0 // pred_fallthru
    _

</llo_original>
